<compile_context>
chip_gen: v7x
topology: tpu7x:2x2x1
jax: 0.10.0
libtpu: 0.0.40
codegen_flags: <defaults>
</compile_context>

<pallas_src>
import jax
import jax.numpy as jnp
from jax.experimental import pallas as pl
from jax.experimental.pallas import tpu as pltpu

INPUT_SIZE = 6      # nn.LSTM input size (LSTM is never used in forward)
HIDDEN = 32         # hidden_size == number of tokens S (out.view(1,-1) must have HIDDEN cols)
OUT = 8             # output_size
FF = 2048           # nn.TransformerEncoderLayer default dim_feedforward
FFR = FF // 128     # FFN weights reshaped to (FFR, 128) for vreg-dense layout
LN_EPS = 1e-5
ELU_ALPHA = 50.0
_INV_SQRT_LN_EPS = float(LN_EPS) ** -0.5   # rsqrt(eps); multiplied by an exact 0 below


def encoder_fc_kernel(scal_ref, ffn_ref, fc_ref, o_ref):
    """Inputs:
      scal_ref: SMEM f32[4]  = [ln1.bias, ln2.gamma, ln2.bias, linear2.bias]
      ffn_ref : VMEM f32[3*FFR, 128]  rows [0:FFR)=linear1.weight, [FFR:2FFR)=linear1.bias,
                                      rows [2FFR:3FFR)=linear2.weight  (all flattened FF vecs)
      fc_ref  : VMEM f32[OUT, HIDDEN+1]  columns [0:HIDDEN)=fc.weight, column HIDDEN=fc.bias
      o_ref   : VMEM f32[OUT, 1]
    """
    beta1 = scal_ref[0]     # ln1 bias   (== every token's state after norm1)
    g2 = scal_ref[1]        # ln2 gamma
    beta2 = scal_ref[2]     # ln2 bias
    b_lin2 = scal_ref[3]    # linear2 bias

    ffn = ffn_ref[...]                       # (3*FFR, 128), 6 dense vregs
    w1 = ffn[0:FFR, :]                       # linear1.weight (flattened FF)
    b1 = ffn[FFR:2 * FFR, :]                 # linear1.bias
    w2 = ffn[2 * FFR:3 * FFR, :]             # linear2.weight

    # --- self-attention + norm1 ---
    # LayerNorm over the size-1 feature dim zeroes (src - mean) exactly, so every
    # token collapses to the constant beta1; the attention block contributes nothing
    # and is skipped (exact vs. the PyTorch reference for finite inputs).
    h = beta1

    # --- feed-forward, evaluated once (all tokens identical after norm1) ---
    h1 = jnp.maximum(h * w1 + b1, 0.0)                         # (FFR, 128)
    prod = h1 * w2
    h2 = jnp.sum(jnp.sum(prod, axis=-1, keepdims=True),        # lane reduce
                 axis=0, keepdims=True) + b_lin2               # sublane reduce -> (1, 1)
    src2 = h + h2                                              # residual, (1, 1)

    # --- norm2 over the size-1 feature dim (kept literal: exact + NaN-propagating) ---
    enc = (src2 - src2) * (g2 * _INV_SQRT_LN_EPS) + beta2      # == beta2, (1, 1)

    # --- fc: out.view(1,-1) @ fc.weight.T + fc.bias, as a lane-axis reduce ---
    fcwb = fc_ref[...]                                         # (OUT, HIDDEN+1), 1 vreg
    w = fcwb[:, :HIDDEN]                                       # (OUT, HIDDEN)
    b = fcwb[:, HIDDEN:]                                       # (OUT, 1)
    fc = jnp.sum(w * enc, axis=-1, keepdims=True) + b          # (OUT, 1)

    # --- ELU(alpha=50); clamp exp on the (discarded) positive branch ---
    neg = ELU_ALPHA * (jnp.exp(jnp.minimum(fc, 0.0)) - 1.0)
    o_ref[...] = jnp.where(fc > 0.0, fc, neg)


def pack_params(params):
    """Host-side packing, hoisted out of the per-call path (done once)."""
    w1 = params["lin1_w"][:, 0].reshape(FFR, 128)              # linear1.weight: (FF, 1)
    b1 = params["lin1_b"].reshape(FFR, 128)
    w2 = params["lin2_w"][0, :].reshape(FFR, 128)              # linear2.weight: (1, FF)
    ffn_packed = jnp.concatenate([w1, b1, w2], axis=0).astype(jnp.float32)   # (48, 128)

    fc_packed = jnp.concatenate(
        [params["fc_w"], params["fc_b"][:, None]], axis=1).astype(jnp.float32)  # (OUT, HIDDEN+1)

    scalars = jnp.stack([
        params["ln1_b"][0], params["ln2_g"][0], params["ln2_b"][0], params["lin2_b"][0],
    ]).astype(jnp.float32)                                     # (4,)
    return scalars, ffn_packed, fc_packed


@jax.jit
def transformer_encoder_forward(x, scalars, ffn_packed, fc_packed):
    """x: (S, 1, 1) float32 with S == HIDDEN (required by out.view(1,-1) -> fc).
    Returns (1, OUT).

    The encoder output is provably independent of x (LayerNorm over d_model=1
    collapses every token to a constant), so x is shape-validated but not read
    by the kernel — exactly matching the PyTorch forward for finite inputs.
    """
    assert x.shape[0] * x.shape[1] * x.shape[2] == HIDDEN, "x.numel() must equal hidden_size"

    out_col = pl.pallas_call(
        encoder_fc_kernel,
        out_shape=jax.ShapeDtypeStruct((OUT, 1), jnp.float32),
        in_specs=[
            pl.BlockSpec(memory_space=pltpu.MemorySpace.SMEM),   # 4 scalars
            pl.BlockSpec(memory_space=pltpu.MemorySpace.VMEM),   # packed FFN weights
            pl.BlockSpec(memory_space=pltpu.MemorySpace.VMEM),   # packed fc weight+bias
        ],
        out_specs=pl.BlockSpec(memory_space=pltpu.MemorySpace.VMEM),
    )(scalars, ffn_packed, fc_packed)
    return out_col.reshape(1, OUT)


def reference_forward(x, p):
    """Pure-JAX reference of the full, literal encoder path (eval-mode dropout)."""
    S = x.shape[0]
    xf = x.reshape(S, 1).astype(jnp.float32)

    def ln(v, g, b):
        mu = jnp.mean(v, -1, keepdims=True)
        var = jnp.mean((v - mu) ** 2, -1, keepdims=True)
        return (v - mu) * jax.lax.rsqrt(var + LN_EPS) * g + b

    q = p["in_proj_w"][0, 0] * xf + p["in_proj_b"][0]
    k = p["in_proj_w"][1, 0] * xf + p["in_proj_b"][1]
    v = p["in_proj_w"][2, 0] * xf + p["in_proj_b"][2]
    scores = q @ k.T
    attn = jax.nn.softmax(scores, axis=-1)
    ao = attn @ v
    y = p["out_proj_w"][0, 0] * ao + p["out_proj_b"][0]
    h = ln(xf + y, p["ln1_g"][0], p["ln1_b"][0])
    h1 = jnp.maximum(h @ p["lin1_w"].T + p["lin1_b"][None, :], 0.0)
    h2 = h1 @ p["lin2_w"].T + p["lin2_b"][None, :]
    enc = ln(h + h2, p["ln2_g"][0], p["ln2_b"][0])
    flat = enc.reshape(1, S)
    fc = flat @ p["fc_w"].T + p["fc_b"][None, :]
    return jnp.where(fc > 0, fc, ELU_ALPHA * (jnp.exp(fc) - 1.0))


def init_params(key):
    ks = jax.random.split(key, 10)
    return {
        "in_proj_w": 0.5 * jax.random.normal(ks[0], (3, 1), jnp.float32),
        "in_proj_b": 0.1 * jax.random.normal(ks[1], (3,), jnp.float32),
        "out_proj_w": 0.5 * jax.random.normal(ks[2], (1, 1), jnp.float32),
        "out_proj_b": 0.1 * jax.random.normal(ks[3], (1,), jnp.float32),
        "lin1_w": 0.05 * jax.random.normal(ks[4], (FF, 1), jnp.float32),
        "lin1_b": 0.05 * jax.random.normal(ks[5], (FF,), jnp.float32),
        "lin2_w": 0.05 * jax.random.normal(ks[6], (1, FF), jnp.float32),
        "lin2_b": jnp.zeros((1,), jnp.float32),
        "ln1_g": jnp.ones((1,), jnp.float32),
        "ln1_b": 0.1 * jnp.ones((1,), jnp.float32),
        "ln2_g": jnp.ones((1,), jnp.float32),
        "ln2_b": 0.2 * jnp.ones((1,), jnp.float32),
        "fc_w": 0.2 * jax.random.normal(ks[7], (OUT, HIDDEN), jnp.float32),
        "fc_b": 0.1 * jax.random.normal(ks[8], (OUT,), jnp.float32),
        # TODO(synk): nn.LSTM(input_size, hidden_size) params exist in the module but are
        # never used in forward, so they are intentionally not materialized.
    }


if __name__ == "__main__":
    key = jax.random.PRNGKey(0)
    kx, kp = jax.random.split(key)
    params = init_params(kp)
    x = jax.random.normal(kx, (HIDDEN, 1, 1), jnp.float32)   # (seq=hidden_size, batch=1, d_model=1)

    packed = pack_params(params)   # hoisted out of the per-call path
    out = transformer_encoder_forward(x, *packed)
    out = jax.block_until_ready(out)

    ref = reference_forward(x, params)
    assert out.shape == (1, OUT)
    assert jnp.allclose(out, ref, rtol=1e-3, atol=1e-3), (out, ref)
    print("KERNEL_OK")
</pallas_src>

<mosaic_0001>
module attributes {stable_mosaic.version = 11 : i64} {
  func.func @encoder_fc_kernel(%arg0: memref<4xf32, #tpu.memory_space<smem>>, %arg1: memref<48x128xf32, #tpu.memory_space<vmem>>, %arg2: memref<8x33xf32, #tpu.memory_space<vmem>>, %arg3: memref<8x1xf32, #tpu.memory_space<vmem>>) attributes {dimension_semantics = [], scalar_prefetch = 0 : i64, scratch_operands = 0 : i64, tpu.core_type = #tpu.core_type<tc>} {
    %c0 = arith.constant 0 : index
    %0 = memref.load %arg0[%c0] : memref<4xf32, #tpu.memory_space<smem>>
    %c1 = arith.constant 1 : index
    %1 = memref.load %arg0[%c1] : memref<4xf32, #tpu.memory_space<smem>>
    %c2 = arith.constant 2 : index
    %2 = memref.load %arg0[%c2] : memref<4xf32, #tpu.memory_space<smem>>
    %c3 = arith.constant 3 : index
    %3 = memref.load %arg0[%c3] : memref<4xf32, #tpu.memory_space<smem>>
    %c0_0 = arith.constant 0 : index
    %c0_1 = arith.constant 0 : index
    %4 = vector.load %arg1[%c0_0, %c0_1] : memref<48x128xf32, #tpu.memory_space<vmem>>, vector<48x128xf32>
    %5 = vector.extract_strided_slice %4 {offsets = [0, 0], sizes = [16, 128], strides = [1, 1]} : vector<48x128xf32> to vector<16x128xf32>
    %6 = vector.extract_strided_slice %4 {offsets = [16, 0], sizes = [16, 128], strides = [1, 1]} : vector<48x128xf32> to vector<16x128xf32>
    %7 = vector.extract_strided_slice %4 {offsets = [32, 0], sizes = [16, 128], strides = [1, 1]} : vector<48x128xf32> to vector<16x128xf32>
    %8 = vector.broadcast %0 : f32 to vector<16x128xf32>
    %9 = arith.mulf %8, %5 : vector<16x128xf32>
    %10 = arith.addf %9, %6 : vector<16x128xf32>
    %cst = arith.constant 0.000000e+00 : f32
    %11 = vector.broadcast %cst : f32 to vector<16x128xf32>
    %12 = arith.maximumf %10, %11 : vector<16x128xf32>
    %13 = arith.mulf %12, %7 : vector<16x128xf32>
    %cst_2 = arith.constant dense<0.000000e+00> : vector<16xf32>
    %14 = vector.multi_reduction <add>, %13, %cst_2 [1] : vector<16x128xf32> to vector<16xf32>
    %15 = vector.shape_cast %14 : vector<16xf32> to vector<16x1xf32>
    %cst_3 = arith.constant dense<0.000000e+00> : vector<1xf32>
    %16 = vector.multi_reduction <add>, %15, %cst_3 [0] : vector<16x1xf32> to vector<1xf32>
    %17 = vector.shape_cast %16 : vector<1xf32> to vector<1x1xf32>
    %18 = vector.broadcast %3 : f32 to vector<1x1xf32>
    %19 = arith.addf %17, %18 : vector<1x1xf32>
    %20 = vector.broadcast %0 : f32 to vector<1x1xf32>
    %21 = arith.addf %20, %19 : vector<1x1xf32>
    %22 = arith.subf %21, %21 : vector<1x1xf32>
    %cst_4 = arith.constant 316.227753 : f32
    %23 = arith.mulf %1, %cst_4 : f32
    %24 = vector.broadcast %23 : f32 to vector<1x1xf32>
    %25 = arith.mulf %22, %24 : vector<1x1xf32>
    %26 = vector.broadcast %2 : f32 to vector<1x1xf32>
    %27 = arith.addf %25, %26 : vector<1x1xf32>
    %c0_5 = arith.constant 0 : index
    %c0_6 = arith.constant 0 : index
    %28 = vector.load %arg2[%c0_5, %c0_6] : memref<8x33xf32, #tpu.memory_space<vmem>>, vector<8x33xf32>
    %29 = vector.extract_strided_slice %28 {offsets = [0, 0], sizes = [8, 32], strides = [1, 1]} : vector<8x33xf32> to vector<8x32xf32>
    %30 = vector.extract_strided_slice %28 {offsets = [0, 32], sizes = [8, 1], strides = [1, 1]} : vector<8x33xf32> to vector<8x1xf32>
    %31 = vector.broadcast %27 : vector<1x1xf32> to vector<8x32xf32>
    %32 = arith.mulf %29, %31 : vector<8x32xf32>
    %cst_7 = arith.constant dense<0.000000e+00> : vector<8xf32>
    %33 = vector.multi_reduction <add>, %32, %cst_7 [1] : vector<8x32xf32> to vector<8xf32>
    %34 = vector.shape_cast %33 : vector<8xf32> to vector<8x1xf32>
    %35 = arith.addf %34, %30 : vector<8x1xf32>
    %cst_8 = arith.constant 0.000000e+00 : f32
    %36 = vector.broadcast %cst_8 : f32 to vector<8x1xf32>
    %37 = arith.minimumf %35, %36 : vector<8x1xf32>
    %38 = math.exp %37 : vector<8x1xf32>
    %cst_9 = arith.constant 1.000000e+00 : f32
    %39 = vector.broadcast %cst_9 : f32 to vector<8x1xf32>
    %40 = arith.subf %38, %39 : vector<8x1xf32>
    %cst_10 = arith.constant 5.000000e+01 : f32
    %41 = vector.broadcast %cst_10 : f32 to vector<8x1xf32>
    %42 = arith.mulf %41, %40 : vector<8x1xf32>
    %cst_11 = arith.constant 0.000000e+00 : f32
    %43 = vector.broadcast %cst_11 : f32 to vector<8x1xf32>
    %44 = arith.cmpf ogt, %35, %43 : vector<8x1xf32>
    %45 = arith.select %44, %35, %42 : vector<8x1xi1>, vector<8x1xf32>
    %c0_12 = arith.constant 0 : index
    %c0_13 = arith.constant 0 : index
    %46 = vector.load %arg3[%c0_12, %c0_13] : memref<8x1xf32, #tpu.memory_space<vmem>>, vector<8x1xf32>
    tpu.vector_store %arg3[%c0_12, %c0_13], %45 {strides = array<i32>} : memref<8x1xf32, #tpu.memory_space<vmem>>, vector<8x1xf32>,
    return
  }
}

</mosaic_0001>

<llo_original>
// kernel: transformer_encoder_forward.1
$region0: #{transformer_encoder_forward.1}
  #allocation0 [shape = 'u32[]', space=smem, size = 0x4, offset = 0x4, fixed_abs, tag = 'smem constant byte address 0x4 - core index']
  #allocation1 [shape = 'u32[144,128]{1,0:T(1,128)}', space=vmem, size = 0x12000, scoped, tag = 'internal scratch']
  %s0 = inlined_call_operand.hbm [shape: f32[4], index: 0, kind: input, shape index: {}]
  %s1 = inlined_call_operand.hbm [shape: f32[48,128], index: 1, kind: input, shape index: {}]
  %s2 = inlined_call_operand.hbm [shape: f32[8,33], index: 2, kind: input, shape index: {}]
  %s3 = inlined_call_operand.vmem [shape: f32[8,1], index: 3, kind: output, shape index: {}]
  %s4 = sld [smem:[#allocation0]]
  $region34: #{transformer_encoder_forward.1} parent=0
    _
  %s6 = ssub.s32 1, %s4
  %s7 = scalar_select 0, %s6, %s4
  $region1: #{transformer_encoder_forward.1} parent=0
    #allocation2 [shape = 'u8[512]{0}', space=smem, size = 0x200, scoped, tag = 'input window, operand 0, single buffered']
    #allocation3 [shape = 's32[1]{0}', space=sflag, size = 0x4, scoped, tag = 'scoped memory for transformer_encoder_forward.1']
    #allocation4 [shape = 's32[1]{0}', space=sflag, size = 0x4, scoped, tag = 'scoped memory for transformer_encoder_forward.1']
    #allocation5 [shape = 'u8[24576]{0}', space=vmem, size = 0x6000, scoped, tag = 'input window, operand 1, single buffered']
    #allocation6 [shape = 'u8[4096]{0}', space=vmem, size = 0x1000, scoped, tag = 'input window, operand 2, single buffered']
    #allocation7 [shape = 's32[1]{0}', space=sflag, size = 0x4, scoped, tag = 'scoped memory for transformer_encoder_forward.1']
    %8 = vsyncpa [#allocation4], 0
    %9 = vsyncpa [#allocation3], 0
    %10 = vsyncpa [#allocation7], 0
    // Predicated region
    $region2: #{transformer_encoder_forward.1} parent=1 // pred_check
      _
    $region3: #{transformer_encoder_forward.1} parent=1 // pred_check_branch
      %12 = sbr.rel (0) target = $region5
    $region4: #{transformer_encoder_forward.1} parent=1 // pred_region
      %s14 = ssub.s32 16, 16
      %15 = vsyncadd [#allocation4], %s14
      %18 = dma.hbm_to_smem %s0, 16, [#allocation2], [#allocation4]
    $region5: #{transformer_encoder_forward.1} parent=1 // pred_fallthru
      _
    // Predicated region
    $region6: #{transformer_encoder_forward.1} parent=1 // pred_check
      _
    $region7: #{transformer_encoder_forward.1} parent=1 // pred_check_branch
      %20 = sbr.rel (0) target = $region9
    $region8: #{transformer_encoder_forward.1} parent=1 // pred_region
      %s22 = ssub.s32 768, 768
      %23 = vsyncadd [#allocation3], %s22
      %s24 = sshll.u32 [#allocation5], 4
      %s25 = int_to_ptr.vmem [resolvable:$true] %s24
      %30 = dma.hbm_to_vmem [thread:$0]  %s1, 768, %s25, [#allocation3], 128, 128, 8
    $region9: #{transformer_encoder_forward.1} parent=1 // pred_fallthru
      _
    // Predicated region
    $region10: #{transformer_encoder_forward.1} parent=1 // pred_check
      _
    $region11: #{transformer_encoder_forward.1} parent=1 // pred_check_branch
      %32 = sbr.rel (0) target = $region13
    $region12: #{transformer_encoder_forward.1} parent=1 // pred_region
      %s34 = ssub.s32 128, 128
      %35 = vsyncadd [#allocation7], %s34
      %s37 = sshll.u32 [#allocation6], 4
      %s38 = int_to_ptr.vmem [resolvable:$true] %s37
      %40 = dma.hbm_to_vmem [thread:$0]  %s2, 128, %s38, [#allocation7]
    $region13: #{transformer_encoder_forward.1} parent=1 // pred_fallthru
      _
    // Predicated region
    $region14: #{transformer_encoder_forward.1} parent=1 // pred_check
      _
    $region15: #{transformer_encoder_forward.1} parent=1 // pred_check_branch
      %42 = sbr.rel (0) target = $region17
    $region16: #{transformer_encoder_forward.1} parent=1 // pred_region
      %43 = dma.done [#allocation4], 16
    $region17: #{transformer_encoder_forward.1} parent=1 // pred_fallthru
      _
    // Predicated region
    $region18: #{transformer_encoder_forward.1} parent=1 // pred_check
      _
    $region19: #{transformer_encoder_forward.1} parent=1 // pred_check_branch
      %45 = sbr.rel (0) target = $region21
    $region20: #{transformer_encoder_forward.1} parent=1 // pred_region
      %46 = dma.done [#allocation3], 768
    $region21: #{transformer_encoder_forward.1} parent=1 // pred_fallthru
      _
    // Predicated region
    $region22: #{transformer_encoder_forward.1} parent=1 // pred_check
      _
    $region23: #{transformer_encoder_forward.1} parent=1 // pred_check_branch
      %48 = sbr.rel (0) target = $region25
    $region24: #{transformer_encoder_forward.1} parent=1 // pred_region
      %49 = dma.done [#allocation7], 128
    $region25: #{transformer_encoder_forward.1} parent=1 // pred_fallthru
      _
    %50 = sfence
    %s51 = sld [smem:[#allocation2]]
    %s52 = sld [smem:[#allocation2 + $0x1]]
    %s53 = sld [smem:[#allocation2 + $0x2]]
    %s54 = sld [smem:[#allocation2 + $0x3]]
    %v55 = vld [vmem:[#allocation5] sm:$0xff]
    %v56 = vld [vmem:[#allocation5 + $0x8] sm:$0xff]
    %v57 = vld [vmem:[#allocation5 + $0x10] sm:$0xff]
    %v58 = vld [vmem:[#allocation5 + $0x18] sm:$0xff]
    %v59 = vld [vmem:[#allocation5 + $0x20] sm:$0xff]
    %v60 = vld [vmem:[#allocation5 + $0x28] sm:$0xff]
    %v61 = vstv %s51
    %v62 = vmul.f32 %v61, %v55
    %v63 = vmul.f32 %v61, %v56
    %v64 = vadd.f32 %v62, %v57
    %v65 = vadd.f32 %v63, %v58
    %v66 = vmax.f32 %v64, 0.0
    %v67 = vmax.f32 %v65, 0.0
    %v68 = vmul.f32 %v66, %v59
    %v69 = vmul.f32 %v67, %v60
    %70 = vadd.xlane.f32.xlu0 %v68
    %v71 = vpop.xlane.xlu0 %70
    %72 = vadd.xlane.f32.xlu0 %v69
    %v73 = vpop.xlane.xlu0 %72
    %v74 = vadd.f32 %v71, %v73
    %v75 = vrot.slane %v74, 4
    %v76 = vadd.f32 %v74, %v75
    %v77 = vrot.slane %v76, 2
    %v78 = vadd.f32 %v76, %v77
    %v79 = vrot.slane %v78, 1
    %v80 = vadd.f32 %v78, %v79
    %v81 = vstv %s54
    %v82 = vadd.f32 %v80, %v81
    %v83 = vadd.f32 %v61, %v82
    %v84 = vsub.f32 %v83, %v83
    %s85 = smul.f32 %s52, 316.22775
    %v86 = vstv %s85
    %v87 = vmul.f32 %v84, %v86
    %v88 = vstv %s53
    %v89 = vadd.f32 %v87, %v88
    %v90 = vld [vmem:[#allocation6] sm:$0xff]
    %v91 = vmul.f32 %v90, %v89
    %vm92 = vcmask 261120
    %v93 = vsel %vm92, %v91, 0.0
    %94 = vadd.xlane.f32.xlu0 %v93
    %v95 = vpop.xlane.xlu0 %94
    %v96 = vadd.f32 %v95, %v90
    %v97 = vmin.f32 %v96, 0.0
    %v98 = vmul.f32 %v97, 1.442695
    %v99 = vpow.pop %v98
    %v100 = vsub.f32 %v99, 1.0
    %v101 = vmul.f32 %v100, 50.0
    %vm102 = vcmp.gt.f32.partialorder %v96, 0.0
    %v103 = vsel %vm102, %v96, %v101
    %105 = vrot.lane.b32.xlu0 %v103, 96
    %v106 = vpop.permute.xlu0 %105
    %vm108 = vcmask 7168
    %109 = vst.msk [vmem:[%s3] sm:$0xff] %vm108, %v106
    // Predicated region
    $region26: #{transformer_encoder_forward.1} parent=1 // pred_check
      _
    $region27: #{transformer_encoder_forward.1} parent=1 // pred_check_branch
      %111 = sbr.rel (0) target = $region29
    $region28: #{transformer_encoder_forward.1} parent=1 // pred_region
      _
    $region29: #{transformer_encoder_forward.1} parent=1 // pred_fallthru
      _
    // Predicated region
    $region30: #{transformer_encoder_forward.1} parent=1 // pred_check
      _
    $region31: #{transformer_encoder_forward.1} parent=1 // pred_check_branch
      %113 = sbr.rel (0) target = $region33
    $region32: #{transformer_encoder_forward.1} parent=1 // pred_region
      _
    $region33: #{transformer_encoder_forward.1} parent=1 // pred_fallthru
      _
    %114 = vsyncpa [#allocation3], 1
    %115 = vsyncpa [#allocation7], 1
    %116 = vsyncpa [#allocation4], 1

</llo_original>
